<compile_context>
chip_gen: v5e
topology: v5e:2x2
jax: 0.10.0
libtpu: 0.0.40
codegen_flags: <defaults>
</compile_context>

<pallas_src>
import functools

import jax
import jax.numpy as jnp
from jax.experimental import pallas as pl
from jax.experimental.pallas import tpu as pltpu


def _round_up(n, m):
    return ((n + m - 1) // m) * m


def _action_encoder_kernel(xT_ref, w1T_ref, b1_ref, w2T_ref, b2_ref, oT_ref):
    # First linear (transposed): (D, A) @ (A, tb) + (D, 1)
    h = jnp.dot(w1T_ref[...], xT_ref[...], preferred_element_type=jnp.float32)
    h = h + b1_ref[...]
    # SiLU in f32 (sigmoid rides the EUP slot, mul on the VPU — free filler
    # under the memory-bound roofline; keep f32 esp. on v5e which has no bf16
    # VPU/EUP).
    h = h * jax.nn.sigmoid(h)
    # Second linear (transposed): (D, D) @ (D, tb) + (D, 1)
    # NOTE: if bf16 weights are passed, the SiLU output is cast to bf16 for the
    # MXU (f32 accumulation is kept via preferred_element_type).
    out = jnp.dot(w2T_ref[...], h.astype(w2T_ref.dtype),
                  preferred_element_type=jnp.float32)
    out = out + b2_ref[...]
    oT_ref[...] = out.astype(oT_ref.dtype)


@functools.partial(jax.jit, static_argnames=("block_batch", "vmem_limit_bytes"))
def action_encoder(x, w1, b1, w2, b2, *, block_batch=2048,
                   vmem_limit_bytes=None):
    """Fused MLP: SiLU(x @ w1 + b1) @ w2 + b2.

    x : (B, num_actions)
    w1: (num_actions, D), b1: (1, D) or (D,)
    w2: (D, D),           b2: (1, D) or (D,)

    block_batch: batch-tile size (rows per grid step), must be a multiple of
    128 (lane width).  Default 2048 keeps double-buffered VMEM usage at
    ~320 B/row * 2048 ≈ 640 KiB — safely under the default scoped-VMEM limit on
    every generation (16 MiB v5e, 32 MiB v6e/v7x).
    """
    B, A = x.shape
    D = w1.shape[1]
    assert w1.shape == (A, D)
    assert w2.shape == (D, D)
    assert block_batch % 128 == 0, "block_batch must be a multiple of 128 lanes"

    # Pick a lane-aligned batch tile; pad the batch up to a whole number of
    # tiles (padded rows are dropped after the call).
    tb = min(block_batch, _round_up(B, 128))
    B_pad = _round_up(B, tb)

    # Layout plumbing (done once, outside the kernel): batch on the lane axis.
    xT = jnp.pad(x, ((0, B_pad - B), (0, 0))).T          # (A, B_pad)
    w1T = w1.T                                           # (D, A)
    w2T = w2.T                                           # (D, D)
    b1c = jnp.reshape(b1, (D, 1))                        # (D, 1)
    b2c = jnp.reshape(b2, (D, 1))                        # (D, 1)

    grid = (B_pad // tb,)

    outT = pl.pallas_call(
        _action_encoder_kernel,
        out_shape=jax.ShapeDtypeStruct((D, B_pad), x.dtype),
        grid_spec=pltpu.PrefetchScalarGridSpec(
            num_scalar_prefetch=0,
            grid=grid,
            in_specs=[
                # xT tile: full feature dim, iterate batch tiles on the lanes.
                pl.BlockSpec((A, tb), lambda i: (0, i)),
                # Weights / biases: same full block every step (resident).
                pl.BlockSpec((D, A), lambda i: (0, 0)),
                pl.BlockSpec((D, 1), lambda i: (0, 0)),
                pl.BlockSpec((D, D), lambda i: (0, 0)),
                pl.BlockSpec((D, 1), lambda i: (0, 0)),
            ],
            out_specs=pl.BlockSpec((D, tb), lambda i: (0, i)),
        ),
        compiler_params=pltpu.CompilerParams(
            dimension_semantics=("parallel",),
            vmem_limit_bytes=vmem_limit_bytes),
    )(xT, w1T, b1c, w2T, b2c)

    # Back to (B, D), dropping batch padding.
    return outT[:, :B].T


def _reference(x, w1, b1, w2, b2):
    h = x @ w1 + b1.reshape(1, -1)
    h = h * jax.nn.sigmoid(h)
    return h @ w2 + b2.reshape(1, -1)


if __name__ == "__main__":
    # Shapes consistent with the module's forward:
    #   num_actions=8, cross_attention_dim=32
    num_actions = 8
    cross_attention_dim = 32

    key = jax.random.PRNGKey(0)
    k_x, k_w1, k_b1, k_w2, k_b2, k_x2 = jax.random.split(key, 6)

    # Deterministic parameter init (mimic PyTorch's uniform(-1/sqrt(fan_in), .)).
    bound1 = 1.0 / (num_actions ** 0.5)
    w1 = jax.random.uniform(k_w1, (num_actions, cross_attention_dim),
                            minval=-bound1, maxval=bound1, dtype=jnp.float32)
    b1 = jax.random.uniform(k_b1, (1, cross_attention_dim),
                            minval=-bound1, maxval=bound1, dtype=jnp.float32)
    bound2 = 1.0 / (cross_attention_dim ** 0.5)
    w2 = jax.random.uniform(k_w2, (cross_attention_dim, cross_attention_dim),
                            minval=-bound2, maxval=bound2, dtype=jnp.float32)
    b2 = jax.random.uniform(k_b2, (1, cross_attention_dim),
                            minval=-bound2, maxval=bound2, dtype=jnp.float32)

    # Small batch (exercises batch padding to one 128-lane tile).
    batch = 8
    x = jax.random.normal(k_x, (batch, num_actions), dtype=jnp.float32)
    out = jax.block_until_ready(action_encoder(x, w1, b1, w2, b2))
    ref = _reference(x, w1, b1, w2, b2)
    assert out.shape == (batch, cross_attention_dim)
    assert jnp.allclose(out, ref, atol=1e-5, rtol=1e-5), "mismatch (small batch)"

    # Larger batch with a multi-step, pipelined grid (3 steps of 128 rows).
    batch2 = 384
    x2 = jax.random.normal(k_x2, (batch2, num_actions), dtype=jnp.float32)
    out2 = jax.block_until_ready(
        action_encoder(x2, w1, b1, w2, b2, block_batch=128))
    ref2 = _reference(x2, w1, b1, w2, b2)
    assert out2.shape == (batch2, cross_attention_dim)
    assert jnp.allclose(out2, ref2, atol=1e-5, rtol=1e-5), "mismatch (tiled batch)"

    print("KERNEL_OK")
</pallas_src>

<mosaic_0001>
module attributes {stable_mosaic.version = 11 : i64} {
  func.func @_action_encoder_kernel(%arg0: i32, %arg1: memref<8x128xf32, #tpu.memory_space<vmem>>, %arg2: memref<32x8xf32, #tpu.memory_space<vmem>>, %arg3: memref<32x1xf32, #tpu.memory_space<vmem>>, %arg4: memref<32x32xf32, #tpu.memory_space<vmem>>, %arg5: memref<32x1xf32, #tpu.memory_space<vmem>>, %arg6: memref<32x128xf32, #tpu.memory_space<vmem>>) attributes {dimension_semantics = [#tpu.dimension_semantics<parallel>], iteration_bounds = array<i64: 1>, scalar_prefetch = 0 : i64, scratch_operands = 0 : i64, tpu.core_type = #tpu.core_type<tc>, window_params = [{transform_indices = @transform_0, window_bounds = array<i64: 8, 128>}, {pipeline_mode = #tpu.pipeline_mode<synchronous>, transform_indices = @transform_1, window_bounds = array<i64: 32, 8>}, {pipeline_mode = #tpu.pipeline_mode<synchronous>, transform_indices = @transform_2, window_bounds = array<i64: 32, 1>}, {pipeline_mode = #tpu.pipeline_mode<synchronous>, transform_indices = @transform_3, window_bounds = array<i64: 32, 32>}, {pipeline_mode = #tpu.pipeline_mode<synchronous>, transform_indices = @transform_4, window_bounds = array<i64: 32, 1>}, {transform_indices = @transform_5, window_bounds = array<i64: 32, 128>}]} {
    %c0 = arith.constant 0 : index
    %c0_0 = arith.constant 0 : index
    %0 = vector.load %arg2[%c0, %c0_0] : memref<32x8xf32, #tpu.memory_space<vmem>>, vector<32x8xf32>
    %c0_1 = arith.constant 0 : index
    %c0_2 = arith.constant 0 : index
    %1 = vector.load %arg1[%c0_1, %c0_2] : memref<8x128xf32, #tpu.memory_space<vmem>>, vector<8x128xf32>
    %cst = arith.constant dense<0.000000e+00> : vector<32x128xf32>
    %2 = tpu.matmul %0, %1, %cst {dimension_numbers = #tpu.dot_dimension_numbers<[1], [0], [0], [1], [0, 0, 1, 1], [], []>} : vector<32x8xf32>, vector<8x128xf32>, vector<32x128xf32> -> vector<32x128xf32>
    %c0_3 = arith.constant 0 : index
    %c0_4 = arith.constant 0 : index
    %3 = vector.load %arg3[%c0_3, %c0_4] : memref<32x1xf32, #tpu.memory_space<vmem>>, vector<32x1xf32>
    %4 = vector.broadcast %3 : vector<32x1xf32> to vector<32x128xf32>
    %5 = arith.addf %2, %4 : vector<32x128xf32>
    %6 = arith.negf %5 : vector<32x128xf32>
    %7 = math.exp %6 : vector<32x128xf32>
    %cst_5 = arith.constant 1.000000e+00 : f32
    %8 = vector.broadcast %cst_5 : f32 to vector<32x128xf32>
    %9 = arith.addf %8, %7 : vector<32x128xf32>
    %10 = arith.divf %8, %9 : vector<32x128xf32>
    %11 = arith.mulf %5, %10 : vector<32x128xf32>
    %c0_6 = arith.constant 0 : index
    %c0_7 = arith.constant 0 : index
    %12 = vector.load %arg4[%c0_6, %c0_7] : memref<32x32xf32, #tpu.memory_space<vmem>>, vector<32x32xf32>
    %cst_8 = arith.constant dense<0.000000e+00> : vector<32x128xf32>
    %13 = tpu.matmul %12, %11, %cst_8 {dimension_numbers = #tpu.dot_dimension_numbers<[1], [0], [0], [1], [0, 0, 1, 1], [], []>} : vector<32x32xf32>, vector<32x128xf32>, vector<32x128xf32> -> vector<32x128xf32>
    %c0_9 = arith.constant 0 : index
    %c0_10 = arith.constant 0 : index
    %14 = vector.load %arg5[%c0_9, %c0_10] : memref<32x1xf32, #tpu.memory_space<vmem>>, vector<32x1xf32>
    %15 = vector.broadcast %14 : vector<32x1xf32> to vector<32x128xf32>
    %16 = arith.addf %13, %15 : vector<32x128xf32>
    %c0_11 = arith.constant 0 : index
    %c0_12 = arith.constant 0 : index
    %17 = vector.load %arg6[%c0_11, %c0_12] : memref<32x128xf32, #tpu.memory_space<vmem>>, vector<32x128xf32>
    tpu.vector_store %arg6[%c0_11, %c0_12], %16 {strides = array<i32>} : memref<32x128xf32, #tpu.memory_space<vmem>>, vector<32x128xf32>,
    return
  }
  func.func @transform_0(%arg0: i32) -> (i32, i32) {
    %c0_i32 = arith.constant 0 : i32
    %c0_i32_0 = arith.constant 0 : i32
    return %c0_i32, %arg0 : i32, i32
  }
  func.func @transform_1(%arg0: i32) -> (i32, i32) {
    %c0_i32 = arith.constant 0 : i32
    %c0_i32_0 = arith.constant 0 : i32
    %c0_i32_1 = arith.constant 0 : i32
    return %c0_i32, %c0_i32_0 : i32, i32
  }
  func.func @transform_2(%arg0: i32) -> (i32, i32) {
    %c0_i32 = arith.constant 0 : i32
    %c0_i32_0 = arith.constant 0 : i32
    %c0_i32_1 = arith.constant 0 : i32
    return %c0_i32, %c0_i32_0 : i32, i32
  }
  func.func @transform_3(%arg0: i32) -> (i32, i32) {
    %c0_i32 = arith.constant 0 : i32
    %c0_i32_0 = arith.constant 0 : i32
    %c0_i32_1 = arith.constant 0 : i32
    return %c0_i32, %c0_i32_0 : i32, i32
  }
  func.func @transform_4(%arg0: i32) -> (i32, i32) {
    %c0_i32 = arith.constant 0 : i32
    %c0_i32_0 = arith.constant 0 : i32
    %c0_i32_1 = arith.constant 0 : i32
    return %c0_i32, %c0_i32_0 : i32, i32
  }
  func.func @transform_5(%arg0: i32) -> (i32, i32) {
    %c0_i32 = arith.constant 0 : i32
    %c0_i32_0 = arith.constant 0 : i32
    return %c0_i32, %arg0 : i32, i32
  }
}

</mosaic_0001>

<llo_original>
// kernel: action_encoder.1
$region0: #{action_encoder.1}
  #allocation0 [shape = 'u32[]', space=smem, size = 0x4, offset = 0x4, fixed_abs, tag = 'smem constant byte address 0x4 - core index']
  #allocation1 [shape = 'u32[72,128]{1,0:T(1,128)}', space=vmem, size = 0x9000, scoped, tag = 'internal scratch']
  %s0 = inlined_call_operand.vmem [shape: f32[8,128], index: 0, kind: input, shape index: {}]
  %s1 = inlined_call_operand.vmem [shape: f32[32,8], index: 1, kind: input, shape index: {}]
  %s2 = inlined_call_operand.vmem [shape: f32[32,1], index: 2, kind: input, shape index: {}]
  %s3 = inlined_call_operand.vmem [shape: f32[32,32], index: 3, kind: input, shape index: {}]
  %s4 = inlined_call_operand.vmem [shape: f32[32,1], index: 4, kind: input, shape index: {}]
  %s5 = inlined_call_operand.vmem [shape: f32[32,128], index: 5, kind: output, shape index: {}]
  %s6 = sld [smem:[#allocation0]]
  $region30: #{action_encoder.1} parent=0
    _
  %s8 = ssub.s32 1, %s6
  %s9 = scalar_select 0, %s8, %s6
  // Predicated region
  $region2: #{action_encoder.1} parent=0 // pred_check
    _
  $region3: #{action_encoder.1} parent=0 // pred_check_branch
    %11 = sbr.rel (0) target = $region5
  $region4: #{action_encoder.1} parent=0 // pred_region
    _
  $region5: #{action_encoder.1} parent=0 // pred_fallthru
    _
  // Predicated region
  $region6: #{action_encoder.1} parent=0 // pred_check
    _
  $region7: #{action_encoder.1} parent=0 // pred_check_branch
    %13 = sbr.rel (0) target = $region9
  $region8: #{action_encoder.1} parent=0 // pred_region
    _
  $region9: #{action_encoder.1} parent=0 // pred_fallthru
    _
  // Predicated region
  $region10: #{action_encoder.1} parent=0 // pred_check
    _
  $region11: #{action_encoder.1} parent=0 // pred_check_branch
    %15 = sbr.rel (0) target = $region13
  $region12: #{action_encoder.1} parent=0 // pred_region
    _
  $region13: #{action_encoder.1} parent=0 // pred_fallthru
    _
  // Predicated region
  $region14: #{action_encoder.1} parent=0 // pred_check
    _
  $region15: #{action_encoder.1} parent=0 // pred_check_branch
    %17 = sbr.rel (0) target = $region17
  $region16: #{action_encoder.1} parent=0 // pred_region
    _
  $region17: #{action_encoder.1} parent=0 // pred_fallthru
    _
  // Predicated region
  $region18: #{action_encoder.1} parent=0 // pred_check
    _
  $region19: #{action_encoder.1} parent=0 // pred_check_branch
    %19 = sbr.rel (0) target = $region21
  $region20: #{action_encoder.1} parent=0 // pred_region
    _
  $region21: #{action_encoder.1} parent=0 // pred_fallthru
    _
  %v20 = vld [vmem:[%s1] sm:$0xff]
  %v21 = vld [vmem:[%s1 + $0x8] sm:$0xff]
  %v22 = vld [vmem:[%s1 + $0x10] sm:$0xff]
  %v23 = vld [vmem:[%s1 + $0x18] sm:$0xff]
  %v24 = vld [vmem:[%s0] sm:$0xff]
  %v25 = vld [vmem:[%s2] sm:$0xff]
  %v26 = vld [vmem:[%s2 + $0x8] sm:$0xff]
  %v27 = vld [vmem:[%s2 + $0x10] sm:$0xff]
  %v28 = vld [vmem:[%s2 + $0x18] sm:$0xff]
  %30 = vset.pattern.permute.xlu0 0
  %31 = vperm.xlu0 %30, %v25
  %v32 = vpop.permute.xlu0 %31
  %35 = vset.pattern.permute.xlu0 0
  %36 = vperm.xlu0 %35, %v26
  %v37 = vpop.permute.xlu0 %36
  %40 = vset.pattern.permute.xlu0 0
  %41 = vperm.xlu0 %40, %v27
  %v42 = vpop.permute.xlu0 %41
  %45 = vset.pattern.permute.xlu0 0
  %46 = vperm.xlu0 %45, %v28
  %v47 = vpop.permute.xlu0 %46
  %vm49 = vcmask 64512
  %v51 = vsel %vm49, %v20, 0
  %v54 = vsel %vm49, %v21, 0
  %v57 = vsel %vm49, %v22, 0
  %v60 = vsel %vm49, %v23, 0
  %62 = vmatpush.msra.mxu0 0.0
  %63 = vmatpush.msra.mxu0 0.0
  %64 = vmatpush.msra.mxu0 0.0
  %65 = vmatpush.msra.mxu0 0.0
  %66 = vmatpush.msra.mxu0 0.0
  %67 = vmatpush.msra.mxu0 0.0
  %68 = vmatpush.msra.mxu0 0.0
  %69 = vmatpush.msra.mxu0 0.0
  %70 = vmatpush.msra.mxu0 0.0
  %71 = vmatpush.msra.mxu0 0.0
  %72 = vmatpush.msra.mxu0 0.0
  %73 = vmatpush.msra.mxu0 0.0
  %74 = vmatpush.msra.mxu0 0.0
  %75 = vmatpush.msra.mxu0 0.0
  %76 = vmatpush.msra.mxu0 0.0
  %77 = vmatpush.msra.mxu0 %v24
  %78 = vmatmul.f32.gmra.mxu0 %v51
  %v79 = vpop.f32.mrf.mxu0
  %v80 = vadd.f32 %v32, %v79
  %81 = vmatmul.f32.gmra.mxu0 %v54
  %v82 = vpop.f32.mrf.mxu0
  %v83 = vadd.f32 %v37, %v82
  %84 = vmatmul.f32.gmra.mxu0 %v57
  %v85 = vpop.f32.mrf.mxu0
  %v86 = vadd.f32 %v42, %v85
  %87 = vmatmul.f32.gmra.mxu0 %v60
  %v88 = vpop.f32.mrf.mxu0
  %v89 = vadd.f32 %v47, %v88
  %90 = vdwg.mxu0
  %v91 = vxor.u32 %v80, 2147483648
  %v92 = vxor.u32 %v83, 2147483648
  %v93 = vxor.u32 %v86, 2147483648
  %v94 = vxor.u32 %v89, 2147483648
  %v95 = vmul.f32 %v91, 1.442695
  %v96 = vpow.pop %v95
  %v97 = vmul.f32 %v92, 1.442695
  %v98 = vpow.pop %v97
  %v99 = vmul.f32 %v93, 1.442695
  %v100 = vpow.pop %v99
  %v101 = vmul.f32 %v94, 1.442695
  %v102 = vpow.pop %v101
  %v103 = vadd.f32 %v96, 1.0
  %v104 = vadd.f32 %v98, 1.0
  %v105 = vadd.f32 %v100, 1.0
  %v106 = vadd.f32 %v102, 1.0
  %v107 = vrcp.pop %v103
  %v108 = vmul.f32 %v103, %v107
  %v109 = vsub.f32 1.0, %v108
  %v110 = vmul.f32 %v107, %v109
  %v111 = vadd.f32 %v107, %v110
  %vm112 = vweird.f32 %v103
  %vm113 = vweird.f32 %v107
  %vm114 = vmor %vm112, %vm113
  %v115 = vsel %vm114, %v107, %v111
  %v116 = vand.u32 2147483647, %v103
  %vm117 = vcmp.eq.f32.partialorder %v116, 8.507059e+37
  %v118 = vand.u32 %v103, 2147483648
  %v119 = vor.u32 1.1754944e-38, %v118
  %v120 = vsel %vm117, %v119, %v115
  %v121 = vmul.f32 1.0, %v120
  %v122 = vrcp.pop %v104
  %v123 = vmul.f32 %v104, %v122
  %v124 = vsub.f32 1.0, %v123
  %v125 = vmul.f32 %v122, %v124
  %v126 = vadd.f32 %v122, %v125
  %vm127 = vweird.f32 %v104
  %vm128 = vweird.f32 %v122
  %vm129 = vmor %vm127, %vm128
  %v130 = vsel %vm129, %v122, %v126
  %v131 = vand.u32 2147483647, %v104
  %vm132 = vcmp.eq.f32.partialorder %v131, 8.507059e+37
  %v133 = vand.u32 %v104, 2147483648
  %v134 = vor.u32 1.1754944e-38, %v133
  %v135 = vsel %vm132, %v134, %v130
  %v136 = vmul.f32 1.0, %v135
  %v137 = vrcp.pop %v105
  %v138 = vmul.f32 %v105, %v137
  %v139 = vsub.f32 1.0, %v138
  %v140 = vmul.f32 %v137, %v139
  %v141 = vadd.f32 %v137, %v140
  %vm142 = vweird.f32 %v105
  %vm143 = vweird.f32 %v137
  %vm144 = vmor %vm142, %vm143
  %v145 = vsel %vm144, %v137, %v141
  %v146 = vand.u32 2147483647, %v105
  %vm147 = vcmp.eq.f32.partialorder %v146, 8.507059e+37
  %v148 = vand.u32 %v105, 2147483648
  %v149 = vor.u32 1.1754944e-38, %v148
  %v150 = vsel %vm147, %v149, %v145
  %v151 = vmul.f32 1.0, %v150
  %v152 = vrcp.pop %v106
  %v153 = vmul.f32 %v106, %v152
  %v154 = vsub.f32 1.0, %v153
  %v155 = vmul.f32 %v152, %v154
  %v156 = vadd.f32 %v152, %v155
  %vm157 = vweird.f32 %v106
  %vm158 = vweird.f32 %v152
  %vm159 = vmor %vm157, %vm158
  %v160 = vsel %vm159, %v152, %v156
  %v161 = vand.u32 2147483647, %v106
  %vm162 = vcmp.eq.f32.partialorder %v161, 8.507059e+37
  %v163 = vand.u32 %v106, 2147483648
  %v164 = vor.u32 1.1754944e-38, %v163
  %v165 = vsel %vm162, %v164, %v160
  %v166 = vmul.f32 1.0, %v165
  %v167 = vmul.f32 %v80, %v121
  %v168 = vmul.f32 %v83, %v136
  %v169 = vmul.f32 %v86, %v151
  %v170 = vmul.f32 %v89, %v166
  %v171 = vld [vmem:[%s3] sm:$0xff]
  %v172 = vld [vmem:[%s3 + $0x8] sm:$0xff]
  %v173 = vld [vmem:[%s3 + $0x10] sm:$0xff]
  %v174 = vld [vmem:[%s3 + $0x18] sm:$0xff]
  %v175 = vld [vmem:[%s4] sm:$0xff]
  %v176 = vld [vmem:[%s4 + $0x8] sm:$0xff]
  %v177 = vld [vmem:[%s4 + $0x10] sm:$0xff]
  %v178 = vld [vmem:[%s4 + $0x18] sm:$0xff]
  %180 = vset.pattern.permute.xlu0 0
  %181 = vperm.xlu0 %180, %v175
  %v182 = vpop.permute.xlu0 %181
  %185 = vset.pattern.permute.xlu0 0
  %186 = vperm.xlu0 %185, %v176
  %v187 = vpop.permute.xlu0 %186
  %190 = vset.pattern.permute.xlu0 0
  %191 = vperm.xlu0 %190, %v177
  %v192 = vpop.permute.xlu0 %191
  %195 = vset.pattern.permute.xlu0 0
  %196 = vperm.xlu0 %195, %v178
  %v197 = vpop.permute.xlu0 %196
  %vm199 = vcmask 261120
  %v201 = vsel %vm199, %v171, 0
  %v204 = vsel %vm199, %v172, 0
  %v207 = vsel %vm199, %v173, 0
  %v210 = vsel %vm199, %v174, 0
  %212 = vmatpush.msra.mxu0 0.0
  %213 = vmatpush.msra.mxu0 0.0
  %214 = vmatpush.msra.mxu0 0.0
  %215 = vmatpush.msra.mxu0 0.0
  %216 = vmatpush.msra.mxu0 0.0
  %217 = vmatpush.msra.mxu0 0.0
  %218 = vmatpush.msra.mxu0 0.0
  %219 = vmatpush.msra.mxu0 0.0
  %220 = vmatpush.msra.mxu0 0.0
  %221 = vmatpush.msra.mxu0 0.0
  %222 = vmatpush.msra.mxu0 0.0
  %223 = vmatpush.msra.mxu0 0.0
  %224 = vmatpush.msra.mxu0 %v170
  %225 = vmatpush.msra.mxu0 %v169
  %226 = vmatpush.msra.mxu0 %v168
  %227 = vmatpush.msra.mxu0 %v167
  %228 = vmatmul.f32.gmra.mxu0 %v201
  %v229 = vpop.f32.mrf.mxu0
  %v230 = vadd.f32 %v182, %v229
  %231 = vmatmul.f32.gmra.mxu0 %v204
  %v232 = vpop.f32.mrf.mxu0
  %v233 = vadd.f32 %v187, %v232
  %234 = vmatmul.f32.gmra.mxu0 %v207
  %v235 = vpop.f32.mrf.mxu0
  %v236 = vadd.f32 %v192, %v235
  %237 = vmatmul.f32.gmra.mxu0 %v210
  %v238 = vpop.f32.mrf.mxu0
  %v239 = vadd.f32 %v197, %v238
  %240 = vdwg.mxu0
  %241 = vst [vmem:[%s5] sm:$0xff] %v230
  %242 = vst [vmem:[%s5 + $0x8] sm:$0xff] %v233
  %243 = vst [vmem:[%s5 + $0x10] sm:$0xff] %v236
  %244 = vst [vmem:[%s5 + $0x18] sm:$0xff] %v239
  // Predicated region
  $region22: #{action_encoder.1} parent=0 // pred_check
    _
  $region23: #{action_encoder.1} parent=0 // pred_check_branch
    %246 = sbr.rel (0) target = $region25
  $region24: #{action_encoder.1} parent=0 // pred_region
    _
  $region25: #{action_encoder.1} parent=0 // pred_fallthru
    _
  // Predicated region
  $region26: #{action_encoder.1} parent=0 // pred_check
    _
  $region27: #{action_encoder.1} parent=0 // pred_check_branch
    %248 = sbr.rel (0) target = $region29
  $region28: #{action_encoder.1} parent=0 // pred_region
    _
  $region29: #{action_encoder.1} parent=0 // pred_fallthru
    _

</llo_original>
